<compile_context>
chip_gen: v5e
topology: v5e:2x2
jax: 0.10.0
libtpu: 0.0.40
codegen_flags: <defaults>
</compile_context>

<pallas_src>
import functools
import math

import jax
import jax.numpy as jnp
from jax import lax
from jax.experimental import pallas as pl
from jax.experimental.pallas import tpu as pltpu


def _mlp_kernel(x_ref, wfc_ref, wproj_ref, o_ref, acc_ref, *, approximate):
    # x_ref:     (tm, E)   activation row tile (invariant along k -> not re-DMA'd)
    # wfc_ref:   (th, E)   c_fc weight slice, PyTorch (out, in) layout
    # wproj_ref: (E, th)   c_proj weight slice, PyTorch (out, in) layout
    # o_ref:     (tm, E)   output row tile
    # acc_ref:   (tm, E)   f32 accumulator, persists across the k (hidden) axis
    k = pl.program_id(1)

    @pl.when(k == 0)
    def _():
        acc_ref[...] = jnp.zeros_like(acc_ref)

    x = x_ref[...]

    # h_blk = x @ W_fc_blk^T : contract E (last dim of both operands) -> (tm, th)
    h = lax.dot_general(
        x, wfc_ref[...],
        dimension_numbers=(((1,), (1,)), ((), ())),
        preferred_element_type=jnp.float32)

    if approximate:
        # tanh-based GELU routes through the EUP (near-free on v6e/v7x);
        # numerics differ slightly from torch's default erf GELU.
        h = jax.nn.gelu(h, approximate=True)
    else:
        # exact (erf-based) GELU — matches torch.nn.functional.gelu default
        h = 0.5 * h * (1.0 + lax.erf(h * (1.0 / math.sqrt(2.0))))

    # acc += h_blk @ W_proj_blk^T : contract th (last dim of both) -> (tm, E)
    acc_ref[...] += lax.dot_general(
        h.astype(wproj_ref.dtype), wproj_ref[...],
        dimension_numbers=(((1,), (1,)), ((), ())),
        preferred_element_type=jnp.float32)

    @pl.when(k == pl.num_programs(1) - 1)
    def _():
        o_ref[...] = acc_ref[...].astype(o_ref.dtype)


def _pick_tile(dim, target, align):
    """Largest tile <= target that divides `dim` and is a multiple of `align`;
    falls back to the full dimension (always a legal block)."""
    if dim <= target:
        return dim
    t = (target // align) * align
    while t >= align:
        if dim % t == 0:
            return t
        t -= align
    return dim


def mlp_forward(x, w_fc, w_proj, *, tm=None, th=None, approximate_gelu=False):
    """x: (B, T, E); w_fc: (4E, E); w_proj: (E, 4E)  (PyTorch nn.Linear layout)."""
    B, T, E = x.shape
    H, E2 = w_fc.shape
    assert E2 == E and w_proj.shape == (E, H)
    M = B * T

    if tm is None:
        tm = _pick_tile(M, 256, 8)      # big row tiles -> MXU-height utilization
    if th is None:
        th = _pick_tile(H, 512, 128)    # stream hidden dim -> bounded VMEM
    assert M % tm == 0 and H % th == 0

    x2d = x.reshape(M, E)

    # advisory cost for XLA's scheduler (overlap with surrounding ops)
    flops = 2 * M * E * H * 2
    bytes_accessed = (x2d.size * x2d.dtype.itemsize
                      + w_fc.size * w_fc.dtype.itemsize
                      + w_proj.size * w_proj.dtype.itemsize
                      + M * E * x.dtype.itemsize)
    cost = pl.CostEstimate(flops=flops, transcendentals=M * H,
                           bytes_accessed=bytes_accessed)

    kernel = functools.partial(_mlp_kernel, approximate=approximate_gelu)

    out2d = pl.pallas_call(
        kernel,
        out_shape=jax.ShapeDtypeStruct((M, E), x.dtype),
        grid_spec=pltpu.PrefetchScalarGridSpec(
            num_scalar_prefetch=0,
            grid=(M // tm, H // th),
            in_specs=[
                pl.BlockSpec((tm, E), lambda i, k: (i, 0)),   # activations
                pl.BlockSpec((th, E), lambda i, k: (k, 0)),   # c_fc slice
                pl.BlockSpec((E, th), lambda i, k: (0, k)),   # c_proj slice
            ],
            out_specs=pl.BlockSpec((tm, E), lambda i, k: (i, 0)),
            scratch_shapes=[pltpu.VMEM((tm, E), jnp.float32)],
        ),
        compiler_params=pltpu.CompilerParams(
            dimension_semantics=("parallel", "arbitrary")),
        cost_estimate=cost,
    )(x2d, w_fc, w_proj)

    return out2d.reshape(B, T, E)


if __name__ == "__main__":
    # small GPT-ish config: batch=2, seq=8, n_embd=32  -> hidden = 128
    B, T, E = 2, 8, 32
    H = 4 * E

    key = jax.random.PRNGKey(0)
    kx, kfc, kproj = jax.random.split(key, 3)

    x = jax.random.normal(kx, (B, T, E), dtype=jnp.float32)
    # deterministic "init" mimicking nn.Linear default scale 1/sqrt(fan_in)
    w_fc = jax.random.normal(kfc, (H, E), dtype=jnp.float32) / math.sqrt(E)
    w_proj = jax.random.normal(kproj, (E, H), dtype=jnp.float32) / math.sqrt(H)

    # reference in plain JAX f32 (exact erf GELU, as in torch F.gelu default)
    h_ref = x.reshape(-1, E) @ w_fc.T
    h_ref = 0.5 * h_ref * (1.0 + lax.erf(h_ref / math.sqrt(2.0)))
    ref = (h_ref @ w_proj.T).reshape(B, T, E)

    # bf16 storage path (recommended): bf16 weights/activations, f32 accumulation
    out_bf16 = mlp_forward(x.astype(jnp.bfloat16),
                           w_fc.astype(jnp.bfloat16),
                           w_proj.astype(jnp.bfloat16))
    out_bf16 = jax.block_until_ready(out_bf16)
    assert jnp.allclose(out_bf16.astype(jnp.float32), ref, atol=5e-2, rtol=5e-2), \
        "bf16 path mismatch vs reference"

    # f32 path should match the reference tightly
    out_f32 = jax.block_until_ready(mlp_forward(x, w_fc, w_proj))
    assert jnp.allclose(out_f32, ref, atol=1e-4, rtol=1e-4), \
        "f32 path mismatch vs reference"

    print("KERNEL_OK")
</pallas_src>

<mosaic_0001>
module attributes {stable_mosaic.version = 11 : i64} {
  func.func @_mlp_kernel(%arg0: i32, %arg1: i32, %arg2: memref<16x32xbf16, #tpu.memory_space<vmem>>, %arg3: memref<128x32xbf16, #tpu.memory_space<vmem>>, %arg4: memref<32x128xbf16, #tpu.memory_space<vmem>>, %arg5: memref<16x32xbf16, #tpu.memory_space<vmem>>, %arg6: memref<16x32xf32, #tpu.memory_space<vmem>>) attributes {dimension_semantics = [#tpu.dimension_semantics<parallel>, #tpu.dimension_semantics<arbitrary>], iteration_bounds = array<i64: 1, 1>, scalar_prefetch = 0 : i64, scratch_operands = 1 : i64, tpu.core_type = #tpu.core_type<tc>, window_params = [{transform_indices = @transform_0, window_bounds = array<i64: 16, 32>}, {transform_indices = @transform_1, window_bounds = array<i64: 128, 32>}, {transform_indices = @transform_2, window_bounds = array<i64: 32, 128>}, {transform_indices = @transform_3, window_bounds = array<i64: 16, 32>}]} {
    %c0_i32 = arith.constant 0 : i32
    %0 = arith.cmpi eq, %arg1, %c0_i32 : i32
    %1 = arith.extui %0 : i1 to i32
    %c0_i32_0 = arith.constant 0 : i32
    %2 = arith.cmpi ne, %1, %c0_i32_0 : i32
    scf.if %2 {
      %cst_16 = arith.constant 0.000000e+00 : f32
      %23 = vector.broadcast %cst_16 : f32 to vector<16x32xf32>
      %c0_17 = arith.constant 0 : index
      %c0_18 = arith.constant 0 : index
      %24 = vector.load %arg6[%c0_17, %c0_18] : memref<16x32xf32, #tpu.memory_space<vmem>>, vector<16x32xf32>
      tpu.vector_store %arg6[%c0_17, %c0_18], %23 {strides = array<i32>} : memref<16x32xf32, #tpu.memory_space<vmem>>, vector<16x32xf32>,
    } else {
    }
    %c0 = arith.constant 0 : index
    %c0_1 = arith.constant 0 : index
    %3 = vector.load %arg2[%c0, %c0_1] : memref<16x32xbf16, #tpu.memory_space<vmem>>, vector<16x32xbf16>
    %c0_2 = arith.constant 0 : index
    %c0_3 = arith.constant 0 : index
    %4 = vector.load %arg3[%c0_2, %c0_3] : memref<128x32xbf16, #tpu.memory_space<vmem>>, vector<128x32xbf16>
    %cst = arith.constant dense<0.000000e+00> : vector<16x128xf32>
    %5 = tpu.matmul %3, %4, %cst {dimension_numbers = #tpu.dot_dimension_numbers<[1], [1], [0], [0], [0, 0, 1, 0], [], []>} : vector<16x32xbf16>, vector<128x32xbf16>, vector<16x128xf32> -> vector<16x128xf32>
    %cst_4 = arith.constant 5.000000e-01 : f32
    %6 = vector.broadcast %cst_4 : f32 to vector<16x128xf32>
    %7 = arith.mulf %6, %5 : vector<16x128xf32>
    %cst_5 = arith.constant 0.707106769 : f32
    %8 = vector.broadcast %cst_5 : f32 to vector<16x128xf32>
    %9 = arith.mulf %5, %8 : vector<16x128xf32>
    %10 = math.erf %9 : vector<16x128xf32>
    %cst_6 = arith.constant 1.000000e+00 : f32
    %11 = vector.broadcast %cst_6 : f32 to vector<16x128xf32>
    %12 = arith.addf %11, %10 : vector<16x128xf32>
    %13 = arith.mulf %7, %12 : vector<16x128xf32>
    %c0_7 = arith.constant 0 : index
    %c0_8 = arith.constant 0 : index
    %14 = vector.load %arg6[%c0_7, %c0_8] : memref<16x32xf32, #tpu.memory_space<vmem>>, vector<16x32xf32>
    %15 = arith.truncf %13 : vector<16x128xf32> to vector<16x128xbf16>
    %c0_9 = arith.constant 0 : index
    %c0_10 = arith.constant 0 : index
    %16 = vector.load %arg4[%c0_9, %c0_10] : memref<32x128xbf16, #tpu.memory_space<vmem>>, vector<32x128xbf16>
    %cst_11 = arith.constant dense<0.000000e+00> : vector<16x32xf32>
    %17 = tpu.matmul %15, %16, %cst_11 {dimension_numbers = #tpu.dot_dimension_numbers<[1], [1], [0], [0], [0, 0, 1, 0], [], []>} : vector<16x128xbf16>, vector<32x128xbf16>, vector<16x32xf32> -> vector<16x32xf32>
    %18 = arith.addf %14, %17 : vector<16x32xf32>
    %c0_12 = arith.constant 0 : index
    %c0_13 = arith.constant 0 : index
    %19 = vector.load %arg6[%c0_12, %c0_13] : memref<16x32xf32, #tpu.memory_space<vmem>>, vector<16x32xf32>
    tpu.vector_store %arg6[%c0_12, %c0_13], %18 {strides = array<i32>} : memref<16x32xf32, #tpu.memory_space<vmem>>, vector<16x32xf32>,
    %c0_i32_14 = arith.constant 0 : i32
    %20 = arith.cmpi eq, %arg1, %c0_i32_14 : i32
    %21 = arith.extui %20 : i1 to i32
    %c0_i32_15 = arith.constant 0 : i32
    %22 = arith.cmpi ne, %21, %c0_i32_15 : i32
    scf.if %22 {
      %c0_16 = arith.constant 0 : index
      %c0_17 = arith.constant 0 : index
      %23 = vector.load %arg6[%c0_16, %c0_17] : memref<16x32xf32, #tpu.memory_space<vmem>>, vector<16x32xf32>
      %24 = arith.truncf %23 : vector<16x32xf32> to vector<16x32xbf16>
      %c0_18 = arith.constant 0 : index
      %c0_19 = arith.constant 0 : index
      %25 = vector.load %arg5[%c0_18, %c0_19] : memref<16x32xbf16, #tpu.memory_space<vmem>>, vector<16x32xbf16>
      tpu.vector_store %arg5[%c0_18, %c0_19], %24 {strides = array<i32>} : memref<16x32xbf16, #tpu.memory_space<vmem>>, vector<16x32xbf16>,
    } else {
    }
    return
  }
  func.func @transform_0(%arg0: i32, %arg1: i32) -> (i32, i32) {
    %c0_i32 = arith.constant 0 : i32
    %c0_i32_0 = arith.constant 0 : i32
    return %arg0, %c0_i32 : i32, i32
  }
  func.func @transform_1(%arg0: i32, %arg1: i32) -> (i32, i32) {
    %c0_i32 = arith.constant 0 : i32
    %c0_i32_0 = arith.constant 0 : i32
    return %arg1, %c0_i32 : i32, i32
  }
  func.func @transform_2(%arg0: i32, %arg1: i32) -> (i32, i32) {
    %c0_i32 = arith.constant 0 : i32
    %c0_i32_0 = arith.constant 0 : i32
    return %c0_i32, %arg1 : i32, i32
  }
  func.func @transform_3(%arg0: i32, %arg1: i32) -> (i32, i32) {
    %c0_i32 = arith.constant 0 : i32
    %c0_i32_0 = arith.constant 0 : i32
    return %arg0, %c0_i32 : i32, i32
  }
}

</mosaic_0001>

<llo_original>
// kernel: tpu_custom_call.1
$region0: #{tpu_custom_call.1}
  #allocation0 [shape = 'u32[]', space=smem, size = 0x4, offset = 0x4, fixed_abs, tag = 'smem constant byte address 0x4 - core index']
  #allocation1 [shape = 'u32[72,128]{1,0:T(1,128)}', space=vmem, size = 0x9000, scoped, tag = 'internal scratch']
  #allocation2 [shape = 'f32[16,32]{1,0:T(8,128)}', space=vmem, size = 0x2000, scoped, tag = 'scratch operand']
  %s0 = inlined_call_operand.vmem [shape: bf16[16,32], index: 0, kind: input, shape index: {}]
  %s1 = inlined_call_operand.vmem [shape: bf16[128,32], index: 1, kind: input, shape index: {}]
  %s2 = inlined_call_operand.vmem [shape: bf16[32,128], index: 2, kind: input, shape index: {}]
  %s3 = inlined_call_operand.hbm [shape: bf16[16,32], index: 3, kind: output, shape index: {}]
  %s4 = sld [smem:[#allocation0]]
  $region30: #{tpu_custom_call.1} parent=0
    _
  %s6 = ssub.s32 1, %s4
  %s7 = scalar_select 0, %s6, %s4
  $region1: #{tpu_custom_call.1} parent=0
    #allocation3 [shape = 'u8[4096]{0}', space=vmem, size = 0x1000, scoped, tag = 'output window, operand 0, single buffered']
    #allocation4 [shape = 's32[1]{0}', space=sflag, size = 0x4, scoped, tag = 'scoped memory for tpu_custom_call.1']
    %8 = vsyncpa [#allocation4], 0
    // Predicated region
    $region2: #{tpu_custom_call.1} parent=1 // pred_check
      _
    $region3: #{tpu_custom_call.1} parent=1 // pred_check_branch
      %10 = sbr.rel (0) target = $region5
    $region4: #{tpu_custom_call.1} parent=1 // pred_region
      _
    $region5: #{tpu_custom_call.1} parent=1 // pred_fallthru
      _
    // Predicated region
    $region6: #{tpu_custom_call.1} parent=1 // pred_check
      _
    $region7: #{tpu_custom_call.1} parent=1 // pred_check_branch
      %12 = sbr.rel (0) target = $region9
    $region8: #{tpu_custom_call.1} parent=1 // pred_region
      _
    $region9: #{tpu_custom_call.1} parent=1 // pred_fallthru
      _
    // Predicated region
    $region10: #{tpu_custom_call.1} parent=1 // pred_check
      _
    $region11: #{tpu_custom_call.1} parent=1 // pred_check_branch
      %14 = sbr.rel (0) target = $region13
    $region12: #{tpu_custom_call.1} parent=1 // pred_region
      _
    $region13: #{tpu_custom_call.1} parent=1 // pred_fallthru
      _
    %p16 = scmp.eq.s32.totalorder 0, 0
    // Predicated region
    $region14: #{tpu_custom_call.1} parent=1 // pred_check
      %p17 = pneg %p16
    $region15: #{tpu_custom_call.1} parent=1 // pred_check_branch
      %19 = sbr.rel (%p17) target = $region17
    $region16: #{tpu_custom_call.1} parent=1 // pred_region
      %vm20 = vcmask 261120
      %21 = vst.msk [vmem:[#allocation2] sm:$0xff] %vm20, 0.0
      %22 = vst.msk [vmem:[#allocation2 + $0x8] sm:$0xff] %vm20, 0.0
    $region17: #{tpu_custom_call.1} parent=1 // pred_fallthru
      _
    %v23 = vld [vmem:[%s0] sm:$0xf]
    %v24 = vld [vmem:[%s0 + $0x4] sm:$0xf]
    %v25 = vld [vmem:[%s1] sm:$0xf]
    %v26 = vld [vmem:[%s1 + $0x4] sm:$0xf]
    %v27 = vld [vmem:[%s1 + $0x8] sm:$0xf]
    %v28 = vld [vmem:[%s1 + $0xc] sm:$0xf]
    %v29 = vld [vmem:[%s1 + $0x10] sm:$0xf]
    %v30 = vld [vmem:[%s1 + $0x14] sm:$0xf]
    %v31 = vld [vmem:[%s1 + $0x18] sm:$0xf]
    %v32 = vld [vmem:[%s1 + $0x1c] sm:$0xf]
    %v33 = vld [vmem:[%s1 + $0x20] sm:$0xf]
    %v34 = vld [vmem:[%s1 + $0x24] sm:$0xf]
    %v35 = vld [vmem:[%s1 + $0x28] sm:$0xf]
    %v36 = vld [vmem:[%s1 + $0x2c] sm:$0xf]
    %v37 = vld [vmem:[%s1 + $0x30] sm:$0xf]
    %v38 = vld [vmem:[%s1 + $0x34] sm:$0xf]
    %v39 = vld [vmem:[%s1 + $0x38] sm:$0xf]
    %v40 = vld [vmem:[%s1 + $0x3c] sm:$0xf]
    %v43 = vunpack.c.l.b16 %v23
    %v44 = vunpack.c.l.b16 %v24
    %v45 = vpack.c.b16 %v44, %v43
    %v62 = vunpack.c.l.b16 %v25
    %v63 = vunpack.c.l.b16 %v26
    %v64 = vunpack.c.l.b16 %v27
    %v65 = vunpack.c.l.b16 %v28
    %v66 = vunpack.c.l.b16 %v29
    %v67 = vunpack.c.l.b16 %v30
    %v68 = vunpack.c.l.b16 %v31
    %v69 = vunpack.c.l.b16 %v32
    %v70 = vunpack.c.l.b16 %v33
    %v71 = vunpack.c.l.b16 %v34
    %v72 = vunpack.c.l.b16 %v35
    %v73 = vunpack.c.l.b16 %v36
    %v74 = vunpack.c.l.b16 %v37
    %v75 = vunpack.c.l.b16 %v38
    %v76 = vunpack.c.l.b16 %v39
    %v77 = vunpack.c.l.b16 %v40
    %v78 = vpack.c.b16 %v63, %v62
    %v79 = vpack.c.b16 %v65, %v64
    %v80 = vpack.c.b16 %v67, %v66
    %v81 = vpack.c.b16 %v69, %v68
    %v82 = vpack.c.b16 %v71, %v70
    %v83 = vpack.c.b16 %v73, %v72
    %v84 = vpack.c.b16 %v75, %v74
    %v85 = vpack.c.b16 %v77, %v76
    %vm86 = vcmask 261120
    %v88 = vsel %vm86, %v45, 0
    %v91 = vsel %vm86, %v78, 0
    %v94 = vsel %vm86, %v79, 0
    %v97 = vsel %vm86, %v80, 0
    %v100 = vsel %vm86, %v81, 0
    %v103 = vsel %vm86, %v82, 0
    %v106 = vsel %vm86, %v83, 0
    %v109 = vsel %vm86, %v84, 0
    %v112 = vsel %vm86, %v85, 0
    %114 = vmatpush.bf16.xpose.msra.mxu0 %v112
    %115 = vmatpush.bf16.xpose.msra.mxu0 %v109
    %116 = vmatpush.bf16.xpose.msra.mxu0 %v106
    %117 = vmatpush.bf16.xpose.msra.mxu0 %v103
    %118 = vmatpush.bf16.xpose.msra.mxu0 %v100
    %119 = vmatpush.bf16.xpose.msra.mxu0 %v97
    %120 = vmatpush.bf16.xpose.msra.mxu0 %v94
    %121 = vmatpush.bf16.xpose.msra.mxu0 %v91
    %122 = vmatmul.bf16.gmra.mxu0 %v88
    %v123 = vpop.f32.mrf.mxu0
    %v124 = vadd.f32 0.0, %v123
    %v125 = vpop.f32.mrf.mxu0
    %v126 = vadd.f32 0.0, %v125
    %127 = vdwg.mxu0
    %v128 = vmul.f32 %v124, 0.5
    %v129 = vmul.f32 %v126, 0.5
    %v130 = vmul.f32 %v124, 0.70710677
    %v131 = vmul.f32 %v126, 0.70710677
    %v132 = vmul.f32 %v130, %v130
    %v133 = vmin.f32 16.0, %v132
    %v134 = vmul.f32 %v133, 2.1237322e-06
    %v135 = vadd.f32 %v134, 0.00028619796
    %v136 = vmul.f32 %v133, %v135
    %v137 = vadd.f32 %v136, 0.0036580483
    %v138 = vmul.f32 %v133, %v137
    %v139 = vadd.f32 %v138, 0.05243302
    %v140 = vmul.f32 %v133, %v139
    %v141 = vadd.f32 %v140, 0.18741608
    %v142 = vmul.f32 %v133, %v141
    %v143 = vadd.f32 %v142, 1.1283791
    %v144 = vmul.f32 %v130, %v143
    %v145 = vmul.f32 %v133, 3.8918573e-05
    %v146 = vadd.f32 %v145, 0.001143296
    %v147 = vmul.f32 %v133, %v146
    %v148 = vadd.f32 %v147, 0.014752088
    %v149 = vmul.f32 %v133, %v148
    %v150 = vadd.f32 %v149, 0.112945676
    %v151 = vmul.f32 %v133, %v150
    %v152 = vadd.f32 %v151, 0.4994258
    %v153 = vmul.f32 %v133, %v152
    %v154 = vadd.f32 %v153, 1.0
    %v155 = vrcp.pop %v154
    %v156 = vmul.f32 %v154, %v155
    %v157 = vsub.f32 1.0, %v156
    %v158 = vmul.f32 %v155, %v157
    %v159 = vadd.f32 %v155, %v158
    %vm160 = vweird.f32 %v154
    %vm161 = vweird.f32 %v155
    %vm162 = vmor %vm160, %vm161
    %v163 = vsel %vm162, %v155, %v159
    %v164 = vand.u32 2147483647, %v154
    %vm165 = vcmp.eq.f32.partialorder %v164, 8.507059e+37
    %v166 = vand.u32 %v154, 2147483648
    %v167 = vor.u32 1.1754944e-38, %v166
    %v168 = vsel %vm165, %v167, %v163
    %v169 = vmul.f32 %v144, %v168
    %v170 = vmin.f32 %v169, 1.0
    %v171 = vmax.f32 %v170, -1.0
    %v172 = vmul.f32 %v131, %v131
    %v173 = vmin.f32 16.0, %v172
    %v174 = vmul.f32 %v173, 2.1237322e-06
    %v175 = vadd.f32 %v174, 0.00028619796
    %v176 = vmul.f32 %v173, %v175
    %v177 = vadd.f32 %v176, 0.0036580483
    %v178 = vmul.f32 %v173, %v177
    %v179 = vadd.f32 %v178, 0.05243302
    %v180 = vmul.f32 %v173, %v179
    %v181 = vadd.f32 %v180, 0.18741608
    %v182 = vmul.f32 %v173, %v181
    %v183 = vadd.f32 %v182, 1.1283791
    %v184 = vmul.f32 %v131, %v183
    %v185 = vmul.f32 %v173, 3.8918573e-05
    %v186 = vadd.f32 %v185, 0.001143296
    %v187 = vmul.f32 %v173, %v186
    %v188 = vadd.f32 %v187, 0.014752088
    %v189 = vmul.f32 %v173, %v188
    %v190 = vadd.f32 %v189, 0.112945676
    %v191 = vmul.f32 %v173, %v190
    %v192 = vadd.f32 %v191, 0.4994258
    %v193 = vmul.f32 %v173, %v192
    %v194 = vadd.f32 %v193, 1.0
    %v195 = vrcp.pop %v194
    %v196 = vmul.f32 %v194, %v195
    %v197 = vsub.f32 1.0, %v196
    %v198 = vmul.f32 %v195, %v197
    %v199 = vadd.f32 %v195, %v198
    %vm200 = vweird.f32 %v194
    %vm201 = vweird.f32 %v195
    %vm202 = vmor %vm200, %vm201
    %v203 = vsel %vm202, %v195, %v199
    %v204 = vand.u32 2147483647, %v194
    %vm205 = vcmp.eq.f32.partialorder %v204, 8.507059e+37
    %v206 = vand.u32 %v194, 2147483648
    %v207 = vor.u32 1.1754944e-38, %v206
    %v208 = vsel %vm205, %v207, %v203
    %v209 = vmul.f32 %v184, %v208
    %v210 = vmin.f32 %v209, 1.0
    %v211 = vmax.f32 %v210, -1.0
    %v212 = vadd.f32 %v171, 1.0
    %v213 = vadd.f32 %v211, 1.0
    %v214 = vmul.f32 %v128, %v212
    %v215 = vmul.f32 %v129, %v213
    %v216 = vld [vmem:[#allocation2] sm:$0xff]
    %v217 = vld [vmem:[#allocation2 + $0x8] sm:$0xff]
    %v218 = vpack.c.bf16 %v215, %v214
    %v219 = vld [vmem:[%s2] sm:$0xf]
    %v220 = vld [vmem:[%s2 + $0x4] sm:$0xf]
    %v221 = vld [vmem:[%s2 + $0x8] sm:$0xf]
    %v222 = vld [vmem:[%s2 + $0xc] sm:$0xf]
    %v227 = vunpack.c.l.b16 %v219
    %v228 = vunpack.c.l.b16 %v220
    %v229 = vunpack.c.l.b16 %v221
    %v230 = vunpack.c.l.b16 %v222
    %v231 = vpack.c.b16 %v228, %v227
    %v232 = vpack.c.b16 %v230, %v229
    %235 = vmatpush.bf16.xpose.msra.mxu0 0
    %236 = vmatpush.bf16.xpose.msra.mxu0 0
    %237 = vmatpush.bf16.xpose.msra.mxu0 0
    %238 = vmatpush.bf16.xpose.msra.mxu0 0
    %239 = vmatpush.bf16.xpose.msra.mxu0 0
    %240 = vmatpush.bf16.xpose.msra.mxu0 0
    %241 = vmatpush.bf16.xpose.msra.mxu0 %v232
    %242 = vmatpush.bf16.xpose.msra.mxu0 %v231
    %243 = vmatmul.bf16.gmra.mxu0 %v218
    %v244 = vpop.f32.mrf.mxu0
    %v245 = vadd.f32 0.0, %v244
    %v246 = vpop.f32.mrf.mxu0
    %v247 = vadd.f32 0.0, %v246
    %248 = vdwg.mxu0
    %v249 = vadd.f32 %v216, %v245
    %v250 = vadd.f32 %v217, %v247
    %251 = vst.msk [vmem:[#allocation2] sm:$0xff] %vm86, %v249
    %252 = vst.msk [vmem:[#allocation2 + $0x8] sm:$0xff] %vm86, %v250
    // Predicated region
    $region18: #{tpu_custom_call.1} parent=1 // pred_check
      %p253 = pneg %p16
    $region19: #{tpu_custom_call.1} parent=1 // pred_check_branch
      %255 = sbr.rel (%p253) target = $region21
    $region20: #{tpu_custom_call.1} parent=1 // pred_region
      %v256 = vld [vmem:[#allocation2] sm:$0xff]
      %v257 = vld [vmem:[#allocation2 + $0x8] sm:$0xff]
      %v258 = vpack.c.bf16 %v256, %v256
      %v259 = vpack.c.bf16 %v257, %v257
      %vm260 = vcmask 257024
      %261 = vst.msk [vmem:[#allocation3] sm:$0xf] %vm260, %v258
      %262 = vst.msk [vmem:[#allocation3 + $0x4] sm:$0xf] %vm260, %v259
    $region21: #{tpu_custom_call.1} parent=1 // pred_fallthru
      _
    // Predicated region
    $region22: #{tpu_custom_call.1} parent=1 // pred_check
      _
    $region23: #{tpu_custom_call.1} parent=1 // pred_check_branch
      %264 = sbr.rel (0) target = $region25
    $region24: #{tpu_custom_call.1} parent=1 // pred_region
      %266 = vsyncadd [#allocation4], 0
      %s267 = sshll.u32 [#allocation3], 4
      %s268 = int_to_ptr.vmem [resolvable:$true] %s267
      %s269 = sshll.u32 %s3, 4
      %s270 = int_to_ptr.hbm [resolvable:$true] %s269
      %275 = dma.vmem_to_hbm [thread:$0]  %s268, 128, %s270, [#allocation4], 64, 64, 4
    $region25: #{tpu_custom_call.1} parent=1 // pred_fallthru
      _
    // Predicated region
    $region26: #{tpu_custom_call.1} parent=1 // pred_check
      _
    $region27: #{tpu_custom_call.1} parent=1 // pred_check_branch
      %277 = sbr.rel (0) target = $region29
    $region28: #{tpu_custom_call.1} parent=1 // pred_region
      %279 = dma.done [#allocation4], 128
    $region29: #{tpu_custom_call.1} parent=1 // pred_fallthru
      _
    %280 = vsyncpa [#allocation4], 1

</llo_original>
